<compile_context>
chip_gen: v5e
topology: v5e:2x2
jax: 0.10.0
libtpu: 0.0.40
codegen_flags: <defaults>
</compile_context>

<pallas_src>
import jax
import jax.numpy as jnp
from jax.experimental import pallas as pl
from jax.experimental.pallas import tpu as pltpu


def _round_up(x, m):
    return (x + m - 1) // m * m


# ---------------------------------------------------------------------------
# Kernels
# ---------------------------------------------------------------------------

def _mlp_resident_kernel(x_ref, w1_ref, b1_ref, w2_ref, b2_ref, o_ref):
    # Resident-weight path: whole weight set lives in VMEM, grid = (batch tiles,).
    # x_ref:  (tB, Fp) bf16    w1_ref: (Fp, Hp) bf16   b1_ref: (1, Hp) f32
    # w2_ref: (Hp, Fp) bf16    b2_ref: (1, Fp)  f32    o_ref:  (tB, Fp) f32
    h = jnp.dot(x_ref[...], w1_ref[...], preferred_element_type=jnp.float32)
    h = jnp.maximum(h + b1_ref[...], 0.0)                     # bias + ReLU in f32
    y = jnp.dot(h.astype(w2_ref.dtype), w2_ref[...],
                preferred_element_type=jnp.float32)
    o_ref[...] = y + b2_ref[...]


def _mlp_tiled_kernel(x_ref, w1_ref, b1_ref, w2_ref, b2_ref, o_ref):
    # Fallback for very large H: reduction over H-chunks, accumulate directly
    # into the resident output tile (output block index constant across k).
    # x_ref:  (tB, Fp) bf16    w1_ref: (Fp, tH) bf16   b1_ref: (1, tH) f32
    # w2_ref: (tH, Fp) bf16    b2_ref: (1, Fp)  f32    o_ref:  (tB, Fp) f32
    k = pl.program_id(1)

    @pl.when(k == 0)
    def _():
        o_ref[...] = jnp.zeros_like(o_ref)

    h = jnp.dot(x_ref[...], w1_ref[...], preferred_element_type=jnp.float32)
    h = jnp.maximum(h + b1_ref[...], 0.0)
    o_ref[...] += jnp.dot(h.astype(w2_ref.dtype), w2_ref[...],
                          preferred_element_type=jnp.float32)

    @pl.when(k == pl.num_programs(1) - 1)
    def _():
        o_ref[...] += b2_ref[...]


# ---------------------------------------------------------------------------
# Parameter packing (done ONCE, outside the per-call hot path)
# ---------------------------------------------------------------------------

def pack_params(w1, b1, w2, b2, *, seq_length):
    """Zero-pad to TPU-friendly shapes and cast matmul operands to bf16.

    w1: (F, H)   b1: (H,) or (1, H)
    w2: (H, F)   b2: (F,) or (1, F)
    Returns a dict of padded arrays + metadata consumed by stacking_forward.
    """
    feat = seq_length * 11
    H = w1.shape[1]
    Fp = _round_up(feat, 128)
    Hp = _round_up(H, 128)

    f32, bf16 = jnp.float32, jnp.bfloat16
    w1p = jnp.zeros((Fp, Hp), bf16).at[:feat, :H].set(w1.astype(bf16))
    b1p = jnp.zeros((1, Hp), f32).at[:, :H].set(b1.reshape(1, H).astype(f32))
    w2p = jnp.zeros((Hp, Fp), bf16).at[:H, :feat].set(w2.astype(bf16))
    b2p = jnp.zeros((1, Fp), f32).at[:, :feat].set(b2.reshape(1, feat).astype(f32))
    return {"w1p": w1p, "b1p": b1p, "w2p": w2p, "b2p": b2p,
            "feat": feat, "Fp": Fp, "H": H, "Hp": Hp}


# ---------------------------------------------------------------------------
# Forward
# ---------------------------------------------------------------------------

# Resident-weight path is used while the bf16 weight set fits comfortably in
# scoped VMEM on every generation (v7x scoped default ~32 MiB).
_RESIDENT_WEIGHT_LIMIT_BYTES = 16 * 1024 * 1024


def stacking_forward(x, packed, *, seq_length):
    """MLP head of `stacking`.

    x: (seq_length, 11) feature map (module semantics, batch of 1) or
       (B, seq_length, 11) batched.
    packed: output of pack_params().
    Returns the same leading-batch layout with trailing (seq_length, 11).
    """
    feat, Fp, Hp = packed["feat"], packed["Fp"], packed["Hp"]
    w1p, b1p, w2p, b2p = packed["w1p"], packed["b1p"], packed["w2p"], packed["b2p"]

    if x.ndim == 2:
        x_flat = x.reshape(1, feat)
        single = True
    else:
        x_flat = x.reshape(x.shape[0], feat)
        single = False
    B = x_flat.shape[0]

    f32, bf16 = jnp.float32, jnp.bfloat16

    # Batch tiling: 256-row tiles once the batch is big enough (v6e/v7x native
    # MXU width, fewer grid steps), 128 otherwise; tiny batches use one 8-row
    # padded tile. Batch axis is "parallel" -> shards over v7x's 2 TCs.
    Bp = _round_up(B, 8)
    if Bp >= 512:
        tB = 256
    elif Bp >= 128:
        tB = 128
    else:
        tB = Bp
    Bp = _round_up(Bp, tB)

    # Only the activations are padded/cast per call (weights are pre-packed).
    xp = jnp.zeros((Bp, Fp), bf16).at[:B, :feat].set(x_flat.astype(bf16))

    weight_bytes = 2 * Fp * Hp * 2  # w1p + w2p, bf16
    if weight_bytes <= _RESIDENT_WEIGHT_LIMIT_BYTES:
        # ---- Resident-weight path: single batch-tile grid axis. ----
        grid = (Bp // tB,)
        out = pl.pallas_call(
            _mlp_resident_kernel,
            out_shape=jax.ShapeDtypeStruct((Bp, Fp), f32),
            grid_spec=pltpu.PrefetchScalarGridSpec(
                num_scalar_prefetch=0,
                grid=grid,
                in_specs=[
                    pl.BlockSpec((tB, Fp), lambda i: (i, 0)),   # x rows
                    pl.BlockSpec((Fp, Hp), lambda i: (0, 0)),   # w1 (resident)
                    pl.BlockSpec((1, Hp), lambda i: (0, 0)),    # b1 (resident)
                    pl.BlockSpec((Hp, Fp), lambda i: (0, 0)),   # w2 (resident)
                    pl.BlockSpec((1, Fp), lambda i: (0, 0)),    # b2 (resident)
                ],
                out_specs=pl.BlockSpec((tB, Fp), lambda i: (i, 0)),
            ),
            compiler_params=pltpu.CompilerParams(
                dimension_semantics=("parallel",)),
        )(xp, w1p, b1p, w2p, b2p)
    else:
        # ---- Fallback for very large H: tile the reduction over H-chunks. ----
        tH = 512 if Hp % 512 == 0 else (256 if Hp % 256 == 0 else 128)
        grid = (Bp // tB, Hp // tH)
        out = pl.pallas_call(
            _mlp_tiled_kernel,
            out_shape=jax.ShapeDtypeStruct((Bp, Fp), f32),
            grid_spec=pltpu.PrefetchScalarGridSpec(
                num_scalar_prefetch=0,
                grid=grid,
                in_specs=[
                    pl.BlockSpec((tB, Fp), lambda i, k: (i, 0)),   # x rows
                    pl.BlockSpec((Fp, tH), lambda i, k: (0, k)),   # w1 H-chunk
                    pl.BlockSpec((1, tH), lambda i, k: (0, k)),    # b1 H-chunk
                    pl.BlockSpec((tH, Fp), lambda i, k: (k, 0)),   # w2 H-chunk
                    pl.BlockSpec((1, Fp), lambda i, k: (0, 0)),    # b2
                ],
                out_specs=pl.BlockSpec((tB, Fp), lambda i, k: (i, 0)),
            ),
            compiler_params=pltpu.CompilerParams(
                dimension_semantics=("parallel", "arbitrary")),
        )(xp, w1p, b1p, w2p, b2p)

    out = out[:B, :feat]
    if single:
        return out.reshape(seq_length, 11)             # x.view(seq_length, 11)
    return out.reshape(B, seq_length, 11)


# ---------------------------------------------------------------------------
# Init + reference + self-test
# ---------------------------------------------------------------------------

def init_params(key, seq_length, hidden):
    """Deterministic init mirroring nn.Linear default (uniform ±1/sqrt(fan_in))."""
    feat = seq_length * 11
    k1, k2, k3, k4 = jax.random.split(key, 4)
    lim1 = 1.0 / jnp.sqrt(feat)
    lim2 = 1.0 / jnp.sqrt(hidden)
    w1 = jax.random.uniform(k1, (feat, hidden), jnp.float32, -lim1, lim1)
    b1 = jax.random.uniform(k2, (1, hidden), jnp.float32, -lim1, lim1)
    w2 = jax.random.uniform(k3, (hidden, feat), jnp.float32, -lim2, lim2)
    b2 = jax.random.uniform(k4, (1, feat), jnp.float32, -lim2, lim2)
    return w1, b1, w2, b2


def _ref_forward(x_flat, w1, b1, w2, b2):
    """Plain-JAX reference mimicking the kernel numerics (bf16 MXU, f32 acc)."""
    bf16, f32 = jnp.bfloat16, jnp.float32
    h = jnp.dot(x_flat.astype(bf16), w1.astype(bf16), preferred_element_type=f32)
    h = jnp.maximum(h + b1.reshape(1, -1).astype(f32), 0.0)
    y = jnp.dot(h.astype(bf16), w2.astype(bf16), preferred_element_type=f32)
    return y + b2.reshape(1, -1).astype(f32)


if __name__ == "__main__":
    seq_length = 8      # small stand-in for default 64
    hidden = 32         # small stand-in for default 1280
    feat = seq_length * 11

    key = jax.random.PRNGKey(0)
    kx, kb, kp = jax.random.split(key, 3)
    w1, b1, w2, b2 = init_params(kp, seq_length, hidden)

    # Pack/pad/cast the weights ONCE (hoisted out of the per-call path).
    packed = pack_params(w1, b1, w2, b2, seq_length=seq_length)

    # --- module-style single-sample forward: (seq_length, 11) -> (seq_length, 11)
    x = jax.random.normal(kx, (seq_length, 11), jnp.float32)
    y = stacking_forward(x, packed, seq_length=seq_length)
    y = jax.block_until_ready(y)
    ref = _ref_forward(x.reshape(1, feat), w1, b1, w2, b2).reshape(seq_length, 11)
    assert y.shape == (seq_length, 11)
    assert jnp.allclose(y, ref, atol=1e-4, rtol=1e-4)

    # --- batched forward: (B, seq_length, 11) -> (B, seq_length, 11)
    B = 4
    xb = jax.random.normal(kb, (B, seq_length, 11), jnp.float32)
    yb = stacking_forward(xb, packed, seq_length=seq_length)
    yb = jax.block_until_ready(yb)
    refb = _ref_forward(xb.reshape(B, feat), w1, b1, w2, b2).reshape(B, seq_length, 11)
    assert yb.shape == (B, seq_length, 11)
    assert jnp.allclose(yb, refb, atol=1e-4, rtol=1e-4)

    print("KERNEL_OK")
</pallas_src>

<mosaic_0001>
module attributes {stable_mosaic.version = 11 : i64} {
  func.func @_mlp_resident_kernel(%arg0: i32, %arg1: memref<8x128xbf16, #tpu.memory_space<vmem>>, %arg2: memref<128x128xbf16, #tpu.memory_space<vmem>>, %arg3: memref<1x128xf32, #tpu.memory_space<vmem>>, %arg4: memref<128x128xbf16, #tpu.memory_space<vmem>>, %arg5: memref<1x128xf32, #tpu.memory_space<vmem>>, %arg6: memref<8x128xf32, #tpu.memory_space<vmem>>) attributes {dimension_semantics = [#tpu.dimension_semantics<parallel>], iteration_bounds = array<i64: 1>, scalar_prefetch = 0 : i64, scratch_operands = 0 : i64, tpu.core_type = #tpu.core_type<tc>, window_params = [{transform_indices = @transform_0, window_bounds = array<i64: 8, 128>}, {pipeline_mode = #tpu.pipeline_mode<synchronous>, transform_indices = @transform_1, window_bounds = array<i64: 128, 128>}, {pipeline_mode = #tpu.pipeline_mode<synchronous>, transform_indices = @transform_2, window_bounds = array<i64: 1, 128>}, {pipeline_mode = #tpu.pipeline_mode<synchronous>, transform_indices = @transform_3, window_bounds = array<i64: 128, 128>}, {pipeline_mode = #tpu.pipeline_mode<synchronous>, transform_indices = @transform_4, window_bounds = array<i64: 1, 128>}, {transform_indices = @transform_5, window_bounds = array<i64: 8, 128>}]} {
    %c0 = arith.constant 0 : index
    %c0_0 = arith.constant 0 : index
    %0 = vector.load %arg1[%c0, %c0_0] : memref<8x128xbf16, #tpu.memory_space<vmem>>, vector<8x128xbf16>
    %c0_1 = arith.constant 0 : index
    %c0_2 = arith.constant 0 : index
    %1 = vector.load %arg2[%c0_1, %c0_2] : memref<128x128xbf16, #tpu.memory_space<vmem>>, vector<128x128xbf16>
    %cst = arith.constant dense<0.000000e+00> : vector<8x128xf32>
    %2 = tpu.matmul %0, %1, %cst {dimension_numbers = #tpu.dot_dimension_numbers<[1], [0], [0], [1], [0, 0, 1, 1], [], []>} : vector<8x128xbf16>, vector<128x128xbf16>, vector<8x128xf32> -> vector<8x128xf32>
    %c0_3 = arith.constant 0 : index
    %c0_4 = arith.constant 0 : index
    %3 = vector.load %arg3[%c0_3, %c0_4] : memref<1x128xf32, #tpu.memory_space<vmem>>, vector<1x128xf32>
    %4 = vector.broadcast %3 : vector<1x128xf32> to vector<8x128xf32>
    %5 = arith.addf %2, %4 : vector<8x128xf32>
    %cst_5 = arith.constant 0.000000e+00 : f32
    %6 = vector.broadcast %cst_5 : f32 to vector<8x128xf32>
    %7 = arith.maximumf %5, %6 : vector<8x128xf32>
    %8 = arith.truncf %7 : vector<8x128xf32> to vector<8x128xbf16>
    %c0_6 = arith.constant 0 : index
    %c0_7 = arith.constant 0 : index
    %9 = vector.load %arg4[%c0_6, %c0_7] : memref<128x128xbf16, #tpu.memory_space<vmem>>, vector<128x128xbf16>
    %cst_8 = arith.constant dense<0.000000e+00> : vector<8x128xf32>
    %10 = tpu.matmul %8, %9, %cst_8 {dimension_numbers = #tpu.dot_dimension_numbers<[1], [0], [0], [1], [0, 0, 1, 1], [], []>} : vector<8x128xbf16>, vector<128x128xbf16>, vector<8x128xf32> -> vector<8x128xf32>
    %c0_9 = arith.constant 0 : index
    %c0_10 = arith.constant 0 : index
    %11 = vector.load %arg5[%c0_9, %c0_10] : memref<1x128xf32, #tpu.memory_space<vmem>>, vector<1x128xf32>
    %12 = vector.broadcast %11 : vector<1x128xf32> to vector<8x128xf32>
    %13 = arith.addf %10, %12 : vector<8x128xf32>
    %c0_11 = arith.constant 0 : index
    %c0_12 = arith.constant 0 : index
    %14 = vector.load %arg6[%c0_11, %c0_12] : memref<8x128xf32, #tpu.memory_space<vmem>>, vector<8x128xf32>
    tpu.vector_store %arg6[%c0_11, %c0_12], %13 {strides = array<i32>} : memref<8x128xf32, #tpu.memory_space<vmem>>, vector<8x128xf32>,
    return
  }
  func.func @transform_0(%arg0: i32) -> (i32, i32) {
    %c0_i32 = arith.constant 0 : i32
    %c0_i32_0 = arith.constant 0 : i32
    return %arg0, %c0_i32 : i32, i32
  }
  func.func @transform_1(%arg0: i32) -> (i32, i32) {
    %c0_i32 = arith.constant 0 : i32
    %c0_i32_0 = arith.constant 0 : i32
    %c0_i32_1 = arith.constant 0 : i32
    return %c0_i32, %c0_i32_0 : i32, i32
  }
  func.func @transform_2(%arg0: i32) -> (i32, i32) {
    %c0_i32 = arith.constant 0 : i32
    %c0_i32_0 = arith.constant 0 : i32
    %c0_i32_1 = arith.constant 0 : i32
    return %c0_i32, %c0_i32_0 : i32, i32
  }
  func.func @transform_3(%arg0: i32) -> (i32, i32) {
    %c0_i32 = arith.constant 0 : i32
    %c0_i32_0 = arith.constant 0 : i32
    %c0_i32_1 = arith.constant 0 : i32
    return %c0_i32, %c0_i32_0 : i32, i32
  }
  func.func @transform_4(%arg0: i32) -> (i32, i32) {
    %c0_i32 = arith.constant 0 : i32
    %c0_i32_0 = arith.constant 0 : i32
    %c0_i32_1 = arith.constant 0 : i32
    return %c0_i32, %c0_i32_0 : i32, i32
  }
  func.func @transform_5(%arg0: i32) -> (i32, i32) {
    %c0_i32 = arith.constant 0 : i32
    %c0_i32_0 = arith.constant 0 : i32
    return %arg0, %c0_i32 : i32, i32
  }
}

</mosaic_0001>

<llo_original>
// kernel: tpu_custom_call.1
$region0: #{tpu_custom_call.1}
  #allocation0 [shape = 'u32[]', space=smem, size = 0x4, offset = 0x4, fixed_abs, tag = 'smem constant byte address 0x4 - core index']
  #allocation1 [shape = 'u32[72,128]{1,0:T(1,128)}', space=vmem, size = 0x9000, scoped, tag = 'internal scratch']
  %s0 = inlined_call_operand.hbm [shape: bf16[8,128], index: 0, kind: input, shape index: {}]
  %s1 = inlined_call_operand.hbm [shape: bf16[128,128], index: 1, kind: input, shape index: {}]
  %s2 = inlined_call_operand.vmem [shape: f32[1,128], index: 2, kind: input, shape index: {}]
  %s3 = inlined_call_operand.hbm [shape: bf16[128,128], index: 3, kind: input, shape index: {}]
  %s4 = inlined_call_operand.vmem [shape: f32[1,128], index: 4, kind: input, shape index: {}]
  %s5 = inlined_call_operand.hbm [shape: f32[8,128], index: 5, kind: output, shape index: {}]
  %s6 = sld [smem:[#allocation0]]
  $region42: #{tpu_custom_call.1} parent=0
    _
  %s8 = ssub.s32 1, %s6
  %s9 = scalar_select 0, %s8, %s6
  $region1: #{tpu_custom_call.1} parent=0
    #allocation2 [shape = 'u8[2048]{0}', space=vmem, size = 0x800, scoped, tag = 'input window, operand 0, single buffered']
    #allocation3 [shape = 's32[1]{0}', space=sflag, size = 0x4, scoped, tag = 'scoped memory for tpu_custom_call.1']
    #allocation4 [shape = 's32[1]{0}', space=sflag, size = 0x4, scoped, tag = 'scoped memory for tpu_custom_call.1']
    #allocation5 [shape = 'u8[32768]{0}', space=vmem, size = 0x8000, scoped, tag = 'input window, operand 1, single buffered']
    #allocation6 [shape = 's32[1]{0}', space=sflag, size = 0x4, scoped, tag = 'scoped memory for tpu_custom_call.1']
    #allocation7 [shape = 'u8[32768]{0}', space=vmem, size = 0x8000, scoped, tag = 'input window, operand 3, single buffered']
    #allocation8 [shape = 'u8[4096]{0}', space=vmem, size = 0x1000, scoped, tag = 'output window, operand 0, single buffered']
    %10 = vsyncpa [#allocation3], 0
    %11 = vsyncpa [#allocation6], 0
    %12 = vsyncpa [#allocation4], 0
    // Predicated region
    $region2: #{tpu_custom_call.1} parent=1 // pred_check
      _
    $region3: #{tpu_custom_call.1} parent=1 // pred_check_branch
      %14 = sbr.rel (0) target = $region5
    $region4: #{tpu_custom_call.1} parent=1 // pred_region
      %16 = vsyncadd [#allocation3], 0
      %s18 = sshll.u32 %s0, 4
      %s19 = int_to_ptr.hbm [resolvable:$true] %s18
      %s20 = sshll.u32 [#allocation2], 4
      %s21 = int_to_ptr.vmem [resolvable:$true] %s20
      %23 = dma.hbm_to_vmem [thread:$0]  %s19, 64, %s21, [#allocation3]
    $region5: #{tpu_custom_call.1} parent=1 // pred_fallthru
      _
    // Predicated region
    $region6: #{tpu_custom_call.1} parent=1 // pred_check
      _
    $region7: #{tpu_custom_call.1} parent=1 // pred_check_branch
      %25 = sbr.rel (0) target = $region9
    $region8: #{tpu_custom_call.1} parent=1 // pred_region
      %27 = vsyncadd [#allocation6], 0
      %s28 = sshll.u32 %s1, 4
      %s29 = int_to_ptr.hbm [resolvable:$true] %s28
      %s30 = sshll.u32 [#allocation5], 4
      %s31 = int_to_ptr.vmem [resolvable:$true] %s30
      %36 = dma.hbm_to_vmem [thread:$0]  %s29, 1024, %s31, [#allocation6], 64, 64, 4
    $region9: #{tpu_custom_call.1} parent=1 // pred_fallthru
      _
    // Predicated region
    $region10: #{tpu_custom_call.1} parent=1 // pred_check
      _
    $region11: #{tpu_custom_call.1} parent=1 // pred_check_branch
      %38 = sbr.rel (0) target = $region13
    $region12: #{tpu_custom_call.1} parent=1 // pred_region
      _
    $region13: #{tpu_custom_call.1} parent=1 // pred_fallthru
      _
    // Predicated region
    $region14: #{tpu_custom_call.1} parent=1 // pred_check
      _
    $region15: #{tpu_custom_call.1} parent=1 // pred_check_branch
      %40 = sbr.rel (0) target = $region17
    $region16: #{tpu_custom_call.1} parent=1 // pred_region
      %42 = vsyncadd [#allocation6], 0
      %s43 = sshll.u32 %s3, 4
      %s44 = int_to_ptr.hbm [resolvable:$true] %s43
      %s45 = sshll.u32 [#allocation7], 4
      %s46 = int_to_ptr.vmem [resolvable:$true] %s45
      %51 = dma.hbm_to_vmem [thread:$0]  %s44, 1024, %s46, [#allocation6], 64, 64, 4
    $region17: #{tpu_custom_call.1} parent=1 // pred_fallthru
      _
    // Predicated region
    $region18: #{tpu_custom_call.1} parent=1 // pred_check
      _
    $region19: #{tpu_custom_call.1} parent=1 // pred_check_branch
      %53 = sbr.rel (0) target = $region21
    $region20: #{tpu_custom_call.1} parent=1 // pred_region
      _
    $region21: #{tpu_custom_call.1} parent=1 // pred_fallthru
      _
    // Predicated region
    $region22: #{tpu_custom_call.1} parent=1 // pred_check
      _
    $region23: #{tpu_custom_call.1} parent=1 // pred_check_branch
      %55 = sbr.rel (0) target = $region25
    $region24: #{tpu_custom_call.1} parent=1 // pred_region
      %57 = dma.done [#allocation3], 64
    $region25: #{tpu_custom_call.1} parent=1 // pred_fallthru
      _
    // Predicated region
    $region26: #{tpu_custom_call.1} parent=1 // pred_check
      _
    $region27: #{tpu_custom_call.1} parent=1 // pred_check_branch
      %59 = sbr.rel (0) target = $region29
    $region28: #{tpu_custom_call.1} parent=1 // pred_region
      %61 = dma.done [#allocation6], 1024
    $region29: #{tpu_custom_call.1} parent=1 // pred_fallthru
      _
    // Predicated region
    $region30: #{tpu_custom_call.1} parent=1 // pred_check
      _
    $region31: #{tpu_custom_call.1} parent=1 // pred_check_branch
      %63 = sbr.rel (0) target = $region33
    $region32: #{tpu_custom_call.1} parent=1 // pred_region
      %65 = dma.done [#allocation6], 1024
    $region33: #{tpu_custom_call.1} parent=1 // pred_fallthru
      _
    %v66 = vld [vmem:[#allocation2] sm:$0xf]
    %v67 = vld [vmem:[#allocation5] sm:$0xf]
    %v68 = vld [vmem:[#allocation5 + $0x4] sm:$0xf]
    %v69 = vld [vmem:[#allocation5 + $0x8] sm:$0xf]
    %v70 = vld [vmem:[#allocation5 + $0xc] sm:$0xf]
    %v71 = vld [vmem:[#allocation5 + $0x10] sm:$0xf]
    %v72 = vld [vmem:[#allocation5 + $0x14] sm:$0xf]
    %v73 = vld [vmem:[#allocation5 + $0x18] sm:$0xf]
    %v74 = vld [vmem:[#allocation5 + $0x1c] sm:$0xf]
    %v75 = vld [vmem:[#allocation5 + $0x20] sm:$0xf]
    %v76 = vld [vmem:[#allocation5 + $0x24] sm:$0xf]
    %v77 = vld [vmem:[#allocation5 + $0x28] sm:$0xf]
    %v78 = vld [vmem:[#allocation5 + $0x2c] sm:$0xf]
    %v79 = vld [vmem:[#allocation5 + $0x30] sm:$0xf]
    %v80 = vld [vmem:[#allocation5 + $0x34] sm:$0xf]
    %v81 = vld [vmem:[#allocation5 + $0x38] sm:$0xf]
    %v82 = vld [vmem:[#allocation5 + $0x3c] sm:$0xf]
    %v83 = vld [vmem:[%s2] sm:$0x1]
    %v85 = vperm.slane %v83, 0
    %v103 = vunpack.c.l.b16 %v67
    %v104 = vunpack.c.l.b16 %v68
    %v105 = vunpack.c.l.b16 %v69
    %v106 = vunpack.c.l.b16 %v70
    %v107 = vunpack.c.l.b16 %v71
    %v108 = vunpack.c.l.b16 %v72
    %v109 = vunpack.c.l.b16 %v73
    %v110 = vunpack.c.l.b16 %v74
    %v111 = vunpack.c.l.b16 %v75
    %v112 = vunpack.c.l.b16 %v76
    %v113 = vunpack.c.l.b16 %v77
    %v114 = vunpack.c.l.b16 %v78
    %v115 = vunpack.c.l.b16 %v79
    %v116 = vunpack.c.l.b16 %v80
    %v117 = vunpack.c.l.b16 %v81
    %v118 = vunpack.c.l.b16 %v82
    %v119 = vpack.c.b16 %v104, %v103
    %v120 = vpack.c.b16 %v106, %v105
    %v121 = vpack.c.b16 %v108, %v107
    %v122 = vpack.c.b16 %v110, %v109
    %v123 = vpack.c.b16 %v112, %v111
    %v124 = vpack.c.b16 %v114, %v113
    %v125 = vpack.c.b16 %v116, %v115
    %v126 = vpack.c.b16 %v118, %v117
    %135 = vmatpush.bf16.msra.mxu0 %v126
    %136 = vmatpush.bf16.msra.mxu0 %v125
    %137 = vmatpush.bf16.msra.mxu0 %v124
    %138 = vmatpush.bf16.msra.mxu0 %v123
    %139 = vmatpush.bf16.msra.mxu0 %v122
    %140 = vmatpush.bf16.msra.mxu0 %v121
    %141 = vmatpush.bf16.msra.mxu0 %v120
    %142 = vmatpush.bf16.msra.mxu0 %v119
    %143 = vmatmul.bf16.gmra.mxu0 %v66
    %v144 = vpop.f32.mrf.mxu0
    %v145 = vadd.f32 %v85, %v144
    %v146 = vpop.f32.mrf.mxu0
    %147 = vdwg.mxu0
    %v148 = vmax.f32 %v145, 0.0
    %v149 = vpack.c.bf16 %v148, %v148
    %v150 = vld [vmem:[#allocation7] sm:$0xf]
    %v151 = vld [vmem:[#allocation7 + $0x4] sm:$0xf]
    %v152 = vld [vmem:[#allocation7 + $0x8] sm:$0xf]
    %v153 = vld [vmem:[#allocation7 + $0xc] sm:$0xf]
    %v154 = vld [vmem:[#allocation7 + $0x10] sm:$0xf]
    %v155 = vld [vmem:[#allocation7 + $0x14] sm:$0xf]
    %v156 = vld [vmem:[#allocation7 + $0x18] sm:$0xf]
    %v157 = vld [vmem:[#allocation7 + $0x1c] sm:$0xf]
    %v158 = vld [vmem:[#allocation7 + $0x20] sm:$0xf]
    %v159 = vld [vmem:[#allocation7 + $0x24] sm:$0xf]
    %v160 = vld [vmem:[#allocation7 + $0x28] sm:$0xf]
    %v161 = vld [vmem:[#allocation7 + $0x2c] sm:$0xf]
    %v162 = vld [vmem:[#allocation7 + $0x30] sm:$0xf]
    %v163 = vld [vmem:[#allocation7 + $0x34] sm:$0xf]
    %v164 = vld [vmem:[#allocation7 + $0x38] sm:$0xf]
    %v165 = vld [vmem:[#allocation7 + $0x3c] sm:$0xf]
    %v166 = vld [vmem:[%s4] sm:$0x1]
    %v168 = vperm.slane %v166, 0
    %v186 = vunpack.c.l.b16 %v150
    %v187 = vunpack.c.l.b16 %v151
    %v188 = vunpack.c.l.b16 %v152
    %v189 = vunpack.c.l.b16 %v153
    %v190 = vunpack.c.l.b16 %v154
    %v191 = vunpack.c.l.b16 %v155
    %v192 = vunpack.c.l.b16 %v156
    %v193 = vunpack.c.l.b16 %v157
    %v194 = vunpack.c.l.b16 %v158
    %v195 = vunpack.c.l.b16 %v159
    %v196 = vunpack.c.l.b16 %v160
    %v197 = vunpack.c.l.b16 %v161
    %v198 = vunpack.c.l.b16 %v162
    %v199 = vunpack.c.l.b16 %v163
    %v200 = vunpack.c.l.b16 %v164
    %v201 = vunpack.c.l.b16 %v165
    %v202 = vpack.c.b16 %v187, %v186
    %v203 = vpack.c.b16 %v189, %v188
    %v204 = vpack.c.b16 %v191, %v190
    %v205 = vpack.c.b16 %v193, %v192
    %v206 = vpack.c.b16 %v195, %v194
    %v207 = vpack.c.b16 %v197, %v196
    %v208 = vpack.c.b16 %v199, %v198
    %v209 = vpack.c.b16 %v201, %v200
    %218 = vmatpush.bf16.msra.mxu0 %v209
    %219 = vmatpush.bf16.msra.mxu0 %v208
    %220 = vmatpush.bf16.msra.mxu0 %v207
    %221 = vmatpush.bf16.msra.mxu0 %v206
    %222 = vmatpush.bf16.msra.mxu0 %v205
    %223 = vmatpush.bf16.msra.mxu0 %v204
    %224 = vmatpush.bf16.msra.mxu0 %v203
    %225 = vmatpush.bf16.msra.mxu0 %v202
    %226 = vmatmul.bf16.gmra.mxu0 %v149
    %v227 = vpop.f32.mrf.mxu0
    %v228 = vadd.f32 %v168, %v227
    %v229 = vpop.f32.mrf.mxu0
    %230 = vdwg.mxu0
    %231 = vst [vmem:[#allocation8] sm:$0xff] %v228
    // Predicated region
    $region34: #{tpu_custom_call.1} parent=1 // pred_check
      _
    $region35: #{tpu_custom_call.1} parent=1 // pred_check_branch
      %233 = sbr.rel (0) target = $region37
    $region36: #{tpu_custom_call.1} parent=1 // pred_region
      %235 = vsyncadd [#allocation4], 0
      %s237 = sshll.u32 [#allocation8], 4
      %s238 = int_to_ptr.vmem [resolvable:$true] %s237
      %s239 = sshll.u32 %s5, 4
      %s240 = int_to_ptr.hbm [resolvable:$true] %s239
      %242 = dma.vmem_to_hbm [thread:$0]  %s238, 128, %s240, [#allocation4]
    $region37: #{tpu_custom_call.1} parent=1 // pred_fallthru
      _
    // Predicated region
    $region38: #{tpu_custom_call.1} parent=1 // pred_check
      _
    $region39: #{tpu_custom_call.1} parent=1 // pred_check_branch
      %244 = sbr.rel (0) target = $region41
    $region40: #{tpu_custom_call.1} parent=1 // pred_region
      %246 = dma.done [#allocation4], 128
    $region41: #{tpu_custom_call.1} parent=1 // pred_fallthru
      _
    %247 = vsyncpa [#allocation3], 1
    %248 = vsyncpa [#allocation6], 1
    %249 = vsyncpa [#allocation4], 1

</llo_original>
